<compile_context>
chip_gen: v5e
topology: v5e:2x2
jax: 0.10.0
libtpu: 0.0.40
codegen_flags: <defaults>
</compile_context>

<pallas_src>
import functools

import jax
import jax.numpy as jnp
import numpy as np
from jax.experimental import pallas as pl
from jax.experimental.pallas import tpu as pltpu


_LANE = 128                      # TPU lane width (last-dim alignment)
_VMEM_LIMIT = 48 * 1024 * 1024   # explicit scoped-VMEM budget (safe on v5e/v6e/v7x)


# ---------------------------------------------------------------------------
# helpers
# ---------------------------------------------------------------------------
def _round_up(x, m):
    return ((x + m - 1) // m) * m


def _pad_lane(c):
    return max(_LANE, _round_up(c, _LANE))


def _choose_tm(m):
    # Large MXU-friendly row tile; clamp to the (8-aligned) problem size.
    return 256 if m >= 256 else _round_up(m, 8)


def _choose_tn(c):
    # c is already a multiple of 128.
    return 256 if c % 256 == 0 else 128


# ---------------------------------------------------------------------------
# Pallas kernels (bias/BN already folded into w and shift)
# ---------------------------------------------------------------------------
def _mm_bn_kernel(x_ref, w_ref, t_ref, o_ref, *, relu):
    acc = jnp.dot(x_ref[...], w_ref[...], preferred_element_type=jnp.float32)
    acc = acc + t_ref[...]
    if relu:
        acc = jnp.maximum(acc, 0.0)
    o_ref[...] = acc.astype(o_ref.dtype)


def _mm_bn_res_relu_kernel(x_ref, w_ref, t_ref, r_ref, o_ref):
    # conv3 + bn3 + identity shortcut + relu
    acc = jnp.dot(x_ref[...], w_ref[...], preferred_element_type=jnp.float32)
    acc = acc + t_ref[...] + r_ref[...].astype(jnp.float32)
    o_ref[...] = jnp.maximum(acc, 0.0).astype(o_ref.dtype)


def _dual_mm_bn_relu_kernel(x_ref, w_ref, xs_ref, ws_ref, t_ref, o_ref):
    # conv3 + bn3 + (shortcut 1x1 conv + bn) + relu, shortcut fused as a
    # second matmul onto the same output tile; t_ref = shift3 + shift_short.
    acc = jnp.dot(x_ref[...], w_ref[...], preferred_element_type=jnp.float32)
    acc = acc + jnp.dot(xs_ref[...], ws_ref[...], preferred_element_type=jnp.float32)
    acc = acc + t_ref[...]
    o_ref[...] = jnp.maximum(acc, 0.0).astype(o_ref.dtype)


# ---------------------------------------------------------------------------
# fused matmul wrapper: out = [relu](x @ w + shift [+ residual] [+ x2 @ w2])
# ---------------------------------------------------------------------------
def fused_matmul(x, w, shift, *, relu=True, residual=None, x2=None, w2=None,
                 out_dtype=jnp.float32):
    M, K = x.shape
    Kc, C = w.shape
    assert K == Kc
    assert C % _LANE == 0, "output channels must be padded to a lane multiple"

    tm = _choose_tm(M)
    tn = _choose_tn(C)
    Mp = _round_up(M, tm)
    if Mp != M:  # pad rows so the grid fully covers M (zero rows are sliced off)
        pad = ((0, Mp - M), (0, 0))
        x = jnp.pad(x, pad)
        if residual is not None:
            residual = jnp.pad(residual, pad)
        if x2 is not None:
            x2 = jnp.pad(x2, pad)

    grid = (Mp // tm, C // tn)
    x_spec = pl.BlockSpec((tm, K), lambda i, j: (i, 0))
    w_spec = pl.BlockSpec((K, tn), lambda i, j: (0, j))
    t_spec = pl.BlockSpec((1, tn), lambda i, j: (0, j))
    o_spec = pl.BlockSpec((tm, tn), lambda i, j: (i, j))
    cparams = pltpu.CompilerParams(
        dimension_semantics=("parallel", "parallel"),
        vmem_limit_bytes=_VMEM_LIMIT,
    )
    out_shape = jax.ShapeDtypeStruct((Mp, C), out_dtype)

    if x2 is not None:
        K2 = x2.shape[1]
        out = pl.pallas_call(
            _dual_mm_bn_relu_kernel,
            out_shape=out_shape,
            grid=grid,
            in_specs=[
                x_spec, w_spec,
                pl.BlockSpec((tm, K2), lambda i, j: (i, 0)),
                pl.BlockSpec((K2, tn), lambda i, j: (0, j)),
                t_spec,
            ],
            out_specs=o_spec,
            compiler_params=cparams,
        )(x, w, x2, w2, shift)
    elif residual is not None:
        out = pl.pallas_call(
            _mm_bn_res_relu_kernel,
            out_shape=out_shape,
            grid=grid,
            in_specs=[x_spec, w_spec, t_spec,
                      pl.BlockSpec((tm, tn), lambda i, j: (i, j))],
            out_specs=o_spec,
            compiler_params=cparams,
        )(x, w, shift, residual)
    else:
        out = pl.pallas_call(
            functools.partial(_mm_bn_kernel, relu=relu),
            out_shape=out_shape,
            grid=grid,
            in_specs=[x_spec, w_spec, t_spec],
            out_specs=o_spec,
            compiler_params=cparams,
        )(x, w, shift)

    return out[:M] if Mp != M else out


# ---------------------------------------------------------------------------
# im2col for the 3x3 conv (pure slicing in JAX; full in-kernel fusion is TODO)
# ---------------------------------------------------------------------------
def im2col_3x3(x_nhwc, stride):
    """x: (N,H,W,C) -> patches (N*Ho*Wo, 9*C) with (kh, kw, cin) ordering."""
    N, H, W, C = x_nhwc.shape
    xp = jnp.pad(x_nhwc, ((0, 0), (1, 1), (1, 1), (0, 0)))
    Ho = (H + 2 - 3) // stride + 1
    Wo = (W + 2 - 3) // stride + 1
    cols = []
    for kh in range(3):
        for kw in range(3):
            cols.append(
                xp[:, kh:kh + (Ho - 1) * stride + 1:stride,
                      kw:kw + (Wo - 1) * stride + 1:stride, :])
    patches = jnp.concatenate(cols, axis=-1)   # (N, Ho, Wo, 9*C)
    return patches.reshape(N * Ho * Wo, 9 * C), Ho, Wo


# ---------------------------------------------------------------------------
# Bottleneck forward (Pallas-backed)
# ---------------------------------------------------------------------------
def bottleneck_forward(x_nchw, p, stride, in_planes, planes,
                       compute_dtype=jnp.bfloat16):
    expansion = 4
    x = jnp.transpose(x_nchw, (0, 2, 3, 1))          # NCHW -> NHWC
    N, H, W, Cin = x.shape
    cin_p, pln_p, cout_p = p["cin_p"], p["planes_p"], p["cout_p"]

    x_pad = jnp.pad(x, ((0, 0), (0, 0), (0, 0), (0, cin_p - Cin)))  # lane pad
    xc = x_pad.astype(compute_dtype)

    # conv1 (1x1) + bn1 + relu
    out = fused_matmul(xc.reshape(N * H * W, cin_p), p["w1"], p["t1"],
                       relu=True, out_dtype=compute_dtype)
    out = out.reshape(N, H, W, pln_p)

    # conv2 (3x3, stride, pad=1) + bn2 + relu
    patches, Ho, Wo = im2col_3x3(out, stride)
    out = fused_matmul(patches, p["w2"], p["t2"],
                       relu=True, out_dtype=compute_dtype)

    # conv3 (1x1) + bn3 + shortcut + relu   (single fused kernel)
    if stride != 1 or in_planes != expansion * planes:
        xs = xc[:, ::stride, ::stride, :].reshape(N * Ho * Wo, cin_p)
        out = fused_matmul(out, p["w3"], p["t3s"],
                           x2=xs, w2=p["ws"], out_dtype=jnp.float32)
    else:
        assert cin_p == cout_p
        short = x_pad.reshape(N * Ho * Wo, cin_p)     # identity, kept in f32
        out = fused_matmul(out, p["w3"], p["t3"],
                           residual=short, out_dtype=jnp.float32)

    out = out.reshape(N, Ho, Wo, cout_p)[..., : expansion * planes]
    return jnp.transpose(out, (0, 3, 1, 2))           # NHWC -> NCHW


# ---------------------------------------------------------------------------
# Parameters: raw (PyTorch-like) + folded/padded (kernel-ready)
# ---------------------------------------------------------------------------
_EPS = 1e-5


def make_raw_params(key, in_planes, planes):
    expansion = 4
    ks = iter(jax.random.split(key, 24))

    def nrm(shape, s=0.1):
        return s * jax.random.normal(next(ks), shape, jnp.float32)

    def bn(c):
        gamma = 0.5 + jax.random.uniform(next(ks), (c,), jnp.float32)
        beta = nrm((c,))
        mean = nrm((c,))
        var = 0.5 + jax.random.uniform(next(ks), (c,), jnp.float32)
        return (gamma, beta, mean, var)

    return dict(
        w1=nrm((in_planes, planes)), b1=nrm((planes,)), bn1=bn(planes),
        w2=nrm((3, 3, planes, planes)), b2=nrm((planes,)), bn2=bn(planes),
        w3=nrm((planes, expansion * planes)), b3=nrm((expansion * planes,)),
        bn3=bn(expansion * planes),
        ws=nrm((in_planes, expansion * planes)), bs=nrm((expansion * planes,)),
        bns=bn(expansion * planes),
    )


def prepare_params(raw, in_planes, planes, compute_dtype):
    """Fold conv bias + BN into (weight, shift), pad channels to lane multiples."""
    expansion = 4
    cin_p = _pad_lane(in_planes)
    pln_p = _pad_lane(planes)
    cout_p = _pad_lane(expansion * planes)

    def fold(w, b, bn_stats):
        gamma, beta, mean, var = bn_stats
        scale = gamma / jnp.sqrt(var + _EPS)
        return w * scale, beta + scale * (b - mean)

    def pad2(w, r, c):
        return jnp.zeros((r, c), jnp.float32).at[: w.shape[0], : w.shape[1]].set(w)

    def pad_shift(t, c):
        return jnp.zeros((1, c), jnp.float32).at[0, : t.shape[0]].set(t)

    p = dict(cin_p=cin_p, planes_p=pln_p, cout_p=cout_p)

    w1f, t1 = fold(raw["w1"], raw["b1"], raw["bn1"])
    p["w1"] = pad2(w1f, cin_p, pln_p).astype(compute_dtype)
    p["t1"] = pad_shift(t1, pln_p)

    w2f, t2 = fold(raw["w2"], raw["b2"], raw["bn2"])           # (3,3,cin,cout)
    w2p = jnp.zeros((3, 3, pln_p, pln_p), jnp.float32)
    w2p = w2p.at[:, :, :planes, :planes].set(w2f)
    p["w2"] = w2p.reshape(9 * pln_p, pln_p).astype(compute_dtype)
    p["t2"] = pad_shift(t2, pln_p)

    w3f, t3 = fold(raw["w3"], raw["b3"], raw["bn3"])
    p["w3"] = pad2(w3f, pln_p, cout_p).astype(compute_dtype)
    p["t3"] = pad_shift(t3, cout_p)

    wsf, ts = fold(raw["ws"], raw["bs"], raw["bns"])
    p["ws"] = pad2(wsf, cin_p, cout_p).astype(compute_dtype)
    p["t3s"] = p["t3"] + pad_shift(ts, cout_p)   # combined conv3 + shortcut shift
    return p


# ---------------------------------------------------------------------------
# Pure-JAX reference: original, un-fused Bottleneck math (eval-mode BN)
# ---------------------------------------------------------------------------
def bottleneck_reference(x_nchw, raw, stride, in_planes, planes):
    expansion = 4
    hp = jax.lax.Precision.HIGHEST
    x = jnp.transpose(x_nchw, (0, 2, 3, 1)).astype(jnp.float32)

    def conv1x1(t, w, b, s=1):
        return jnp.einsum("nhwc,cd->nhwd", t[:, ::s, ::s, :], w, precision=hp) + b

    def conv3x3(t, w, b, s):
        out = jax.lax.conv_general_dilated(
            t, w, window_strides=(s, s), padding=((1, 1), (1, 1)),
            dimension_numbers=("NHWC", "HWIO", "NHWC"), precision=hp)
        return out + b

    def bn(t, stats):
        gamma, beta, mean, var = stats
        return (t - mean) / jnp.sqrt(var + _EPS) * gamma + beta

    out = jax.nn.relu(bn(conv1x1(x, raw["w1"], raw["b1"]), raw["bn1"]))
    out = jax.nn.relu(bn(conv3x3(out, raw["w2"], raw["b2"], stride), raw["bn2"]))
    out = bn(conv1x1(out, raw["w3"], raw["b3"]), raw["bn3"])
    if stride != 1 or in_planes != expansion * planes:
        short = bn(conv1x1(x, raw["ws"], raw["bs"], s=stride), raw["bns"])
    else:
        short = x
    out = jax.nn.relu(out + short)
    return jnp.transpose(out, (0, 3, 1, 2))


# ---------------------------------------------------------------------------
if __name__ == "__main__":
    key = jax.random.PRNGKey(0)

    # (N, in_planes, H, W, planes, stride): conv-shortcut and identity-shortcut
    configs = [
        (2, 8, 8, 8, 4, 2),    # stride 2, in_planes != 4*planes -> conv shortcut
        (2, 16, 8, 8, 4, 1),   # stride 1, in_planes == 4*planes -> identity
    ]

    for cfg_i, (N, cin, H, W, planes, stride) in enumerate(configs):
        kx, kp = jax.random.split(jax.random.fold_in(key, cfg_i))
        x = jax.random.normal(kx, (N, cin, H, W), jnp.float32)   # NCHW input
        raw = make_raw_params(kp, cin, planes)
        ref = np.asarray(bottleneck_reference(x, raw, stride, cin, planes))

        Ho = (H - 1) // stride + 1
        for dtype, tol in ((jnp.float32, 1e-2), (jnp.bfloat16, 3e-2)):
            params = prepare_params(raw, cin, planes, dtype)
            out = bottleneck_forward(x, params, stride, cin, planes, dtype)
            out = jax.block_until_ready(out)
            assert out.shape == (N, 4 * planes, Ho, Ho)
            np.testing.assert_allclose(np.asarray(out), ref, rtol=tol, atol=tol)

    print("KERNEL_OK")
</pallas_src>

<mosaic_0001>
module attributes {stable_mosaic.version = 11 : i64} {
  func.func @_mm_bn_kernel(%arg0: i32, %arg1: i32, %arg2: memref<128x128xf32, #tpu.memory_space<vmem>>, %arg3: memref<128x128xf32, #tpu.memory_space<vmem>>, %arg4: memref<1x128xf32, #tpu.memory_space<vmem>>, %arg5: memref<128x128xf32, #tpu.memory_space<vmem>>) attributes {dimension_semantics = [#tpu.dimension_semantics<parallel>, #tpu.dimension_semantics<parallel>], iteration_bounds = array<i64: 1, 1>, scalar_prefetch = 0 : i64, scratch_operands = 0 : i64, tpu.core_type = #tpu.core_type<tc>, window_params = [{transform_indices = @transform_0, window_bounds = array<i64: 128, 128>}, {transform_indices = @transform_1, window_bounds = array<i64: 128, 128>}, {transform_indices = @transform_2, window_bounds = array<i64: 1, 128>}, {transform_indices = @transform_3, window_bounds = array<i64: 128, 128>}]} {
    %c0 = arith.constant 0 : index
    %c0_0 = arith.constant 0 : index
    %0 = vector.load %arg2[%c0, %c0_0] : memref<128x128xf32, #tpu.memory_space<vmem>>, vector<128x128xf32>
    %c0_1 = arith.constant 0 : index
    %c0_2 = arith.constant 0 : index
    %1 = vector.load %arg3[%c0_1, %c0_2] : memref<128x128xf32, #tpu.memory_space<vmem>>, vector<128x128xf32>
    %cst = arith.constant dense<0.000000e+00> : vector<128x128xf32>
    %2 = tpu.matmul %0, %1, %cst {dimension_numbers = #tpu.dot_dimension_numbers<[1], [0], [0], [1], [0, 0, 1, 1], [], []>} : vector<128x128xf32>, vector<128x128xf32>, vector<128x128xf32> -> vector<128x128xf32>
    %c0_3 = arith.constant 0 : index
    %c0_4 = arith.constant 0 : index
    %3 = vector.load %arg4[%c0_3, %c0_4] : memref<1x128xf32, #tpu.memory_space<vmem>>, vector<1x128xf32>
    %4 = vector.broadcast %3 : vector<1x128xf32> to vector<128x128xf32>
    %5 = arith.addf %2, %4 : vector<128x128xf32>
    %cst_5 = arith.constant 0.000000e+00 : f32
    %6 = vector.broadcast %cst_5 : f32 to vector<128x128xf32>
    %7 = arith.maximumf %5, %6 : vector<128x128xf32>
    %c0_6 = arith.constant 0 : index
    %c0_7 = arith.constant 0 : index
    %8 = vector.load %arg5[%c0_6, %c0_7] : memref<128x128xf32, #tpu.memory_space<vmem>>, vector<128x128xf32>
    tpu.vector_store %arg5[%c0_6, %c0_7], %7 {strides = array<i32>} : memref<128x128xf32, #tpu.memory_space<vmem>>, vector<128x128xf32>,
    return
  }
  func.func @transform_0(%arg0: i32, %arg1: i32) -> (i32, i32) {
    %c0_i32 = arith.constant 0 : i32
    %c0_i32_0 = arith.constant 0 : i32
    return %arg0, %c0_i32 : i32, i32
  }
  func.func @transform_1(%arg0: i32, %arg1: i32) -> (i32, i32) {
    %c0_i32 = arith.constant 0 : i32
    %c0_i32_0 = arith.constant 0 : i32
    return %c0_i32, %arg1 : i32, i32
  }
  func.func @transform_2(%arg0: i32, %arg1: i32) -> (i32, i32) {
    %c0_i32 = arith.constant 0 : i32
    %c0_i32_0 = arith.constant 0 : i32
    return %c0_i32, %arg1 : i32, i32
  }
  func.func @transform_3(%arg0: i32, %arg1: i32) -> (i32, i32) {
    %c0_i32 = arith.constant 0 : i32
    return %arg0, %arg1 : i32, i32
  }
}

</mosaic_0001>

<llo_original>
// kernel: tpu_custom_call.1
$region0: #{tpu_custom_call.1}
  #allocation0 [shape = 'u32[]', space=smem, size = 0x4, offset = 0x4, fixed_abs, tag = 'smem constant byte address 0x4 - core index']
  #allocation1 [shape = 'u32[72,128]{1,0:T(1,128)}', space=vmem, size = 0x9000, scoped, tag = 'internal scratch']
  %s0 = inlined_call_operand.hbm [shape: f32[128,128], index: 0, kind: input, shape index: {}]
  %s1 = inlined_call_operand.hbm [shape: f32[128,128], index: 1, kind: input, shape index: {}]
  %s2 = inlined_call_operand.vmem [shape: f32[1,128], index: 2, kind: input, shape index: {}]
  %s3 = inlined_call_operand.hbm [shape: f32[128,128], index: 3, kind: output, shape index: {}]
  %s4 = sld [smem:[#allocation0]]
  $region30: #{tpu_custom_call.1} parent=0
    _
  %s6 = ssub.s32 1, %s4
  %s7 = scalar_select 0, %s6, %s4
  $region1: #{tpu_custom_call.1} parent=0
    #allocation2 [shape = 'u8[65536]{0}', space=vmem, size = 0x10000, scoped, tag = 'input window, operand 0, single buffered']
    #allocation3 [shape = 's32[1]{0}', space=sflag, size = 0x4, scoped, tag = 'scoped memory for tpu_custom_call.1']
    #allocation4 [shape = 's32[1]{0}', space=sflag, size = 0x4, scoped, tag = 'scoped memory for tpu_custom_call.1']
    #allocation5 [shape = 'u8[65536]{0}', space=vmem, size = 0x10000, scoped, tag = 'input window, operand 1, single buffered']
    #allocation6 [shape = 's32[1]{0}', space=sflag, size = 0x4, scoped, tag = 'scoped memory for tpu_custom_call.1']
    #allocation7 [shape = 'u8[65536]{0}', space=vmem, size = 0x10000, scoped, tag = 'output window, operand 0, single buffered']
    %8 = vsyncpa [#allocation3], 0
    %9 = vsyncpa [#allocation6], 0
    %10 = vsyncpa [#allocation4], 0
    // Predicated region
    $region2: #{tpu_custom_call.1} parent=1 // pred_check
      _
    $region3: #{tpu_custom_call.1} parent=1 // pred_check_branch
      %12 = sbr.rel (0) target = $region5
    $region4: #{tpu_custom_call.1} parent=1 // pred_region
      %14 = vsyncadd [#allocation3], 0
      %s15 = sshll.u32 %s0, 4
      %s16 = int_to_ptr.hbm [resolvable:$true] %s15
      %s17 = sshll.u32 [#allocation2], 4
      %s18 = int_to_ptr.vmem [resolvable:$true] %s17
      %23 = dma.hbm_to_vmem [thread:$0]  %s16, 2048, %s18, [#allocation3], 128, 128, 8
    $region5: #{tpu_custom_call.1} parent=1 // pred_fallthru
      _
    // Predicated region
    $region6: #{tpu_custom_call.1} parent=1 // pred_check
      _
    $region7: #{tpu_custom_call.1} parent=1 // pred_check_branch
      %25 = sbr.rel (0) target = $region9
    $region8: #{tpu_custom_call.1} parent=1 // pred_region
      %27 = vsyncadd [#allocation6], 0
      %s28 = sshll.u32 %s1, 4
      %s29 = int_to_ptr.hbm [resolvable:$true] %s28
      %s30 = sshll.u32 [#allocation5], 4
      %s31 = int_to_ptr.vmem [resolvable:$true] %s30
      %36 = dma.hbm_to_vmem [thread:$0]  %s29, 2048, %s31, [#allocation6], 128, 128, 8
    $region9: #{tpu_custom_call.1} parent=1 // pred_fallthru
      _
    // Predicated region
    $region10: #{tpu_custom_call.1} parent=1 // pred_check
      _
    $region11: #{tpu_custom_call.1} parent=1 // pred_check_branch
      %38 = sbr.rel (0) target = $region13
    $region12: #{tpu_custom_call.1} parent=1 // pred_region
      _
    $region13: #{tpu_custom_call.1} parent=1 // pred_fallthru
      _
    // Predicated region
    $region14: #{tpu_custom_call.1} parent=1 // pred_check
      _
    $region15: #{tpu_custom_call.1} parent=1 // pred_check_branch
      %40 = sbr.rel (0) target = $region17
    $region16: #{tpu_custom_call.1} parent=1 // pred_region
      %42 = dma.done [#allocation3], 2048
    $region17: #{tpu_custom_call.1} parent=1 // pred_fallthru
      _
    // Predicated region
    $region18: #{tpu_custom_call.1} parent=1 // pred_check
      _
    $region19: #{tpu_custom_call.1} parent=1 // pred_check_branch
      %44 = sbr.rel (0) target = $region21
    $region20: #{tpu_custom_call.1} parent=1 // pred_region
      %46 = dma.done [#allocation6], 2048
    $region21: #{tpu_custom_call.1} parent=1 // pred_fallthru
      _
    %v47 = vld [vmem:[#allocation2] sm:$0xff]
    %v48 = vld [vmem:[#allocation2 + $0x8] sm:$0xff]
    %v49 = vld [vmem:[#allocation2 + $0x10] sm:$0xff]
    %v50 = vld [vmem:[#allocation2 + $0x18] sm:$0xff]
    %v51 = vld [vmem:[#allocation2 + $0x20] sm:$0xff]
    %v52 = vld [vmem:[#allocation2 + $0x28] sm:$0xff]
    %v53 = vld [vmem:[#allocation2 + $0x30] sm:$0xff]
    %v54 = vld [vmem:[#allocation2 + $0x38] sm:$0xff]
    %v55 = vld [vmem:[#allocation2 + $0x40] sm:$0xff]
    %v56 = vld [vmem:[#allocation2 + $0x48] sm:$0xff]
    %v57 = vld [vmem:[#allocation2 + $0x50] sm:$0xff]
    %v58 = vld [vmem:[#allocation2 + $0x58] sm:$0xff]
    %v59 = vld [vmem:[#allocation2 + $0x60] sm:$0xff]
    %v60 = vld [vmem:[#allocation2 + $0x68] sm:$0xff]
    %v61 = vld [vmem:[#allocation2 + $0x70] sm:$0xff]
    %v62 = vld [vmem:[#allocation2 + $0x78] sm:$0xff]
    %v63 = vld [vmem:[#allocation5] sm:$0xff]
    %v64 = vld [vmem:[#allocation5 + $0x8] sm:$0xff]
    %v65 = vld [vmem:[#allocation5 + $0x10] sm:$0xff]
    %v66 = vld [vmem:[#allocation5 + $0x18] sm:$0xff]
    %v67 = vld [vmem:[#allocation5 + $0x20] sm:$0xff]
    %v68 = vld [vmem:[#allocation5 + $0x28] sm:$0xff]
    %v69 = vld [vmem:[#allocation5 + $0x30] sm:$0xff]
    %v70 = vld [vmem:[#allocation5 + $0x38] sm:$0xff]
    %v71 = vld [vmem:[#allocation5 + $0x40] sm:$0xff]
    %v72 = vld [vmem:[#allocation5 + $0x48] sm:$0xff]
    %v73 = vld [vmem:[#allocation5 + $0x50] sm:$0xff]
    %v74 = vld [vmem:[#allocation5 + $0x58] sm:$0xff]
    %v75 = vld [vmem:[#allocation5 + $0x60] sm:$0xff]
    %v76 = vld [vmem:[#allocation5 + $0x68] sm:$0xff]
    %v77 = vld [vmem:[#allocation5 + $0x70] sm:$0xff]
    %v78 = vld [vmem:[#allocation5 + $0x78] sm:$0xff]
    %v79 = vld [vmem:[%s2] sm:$0x1]
    %v81 = vperm.slane %v79, 0
    %83 = vmatpush.msra.mxu0 %v78
    %84 = vmatpush.msra.mxu0 %v77
    %85 = vmatpush.msra.mxu0 %v76
    %86 = vmatpush.msra.mxu0 %v75
    %87 = vmatpush.msra.mxu0 %v74
    %88 = vmatpush.msra.mxu0 %v73
    %89 = vmatpush.msra.mxu0 %v72
    %90 = vmatpush.msra.mxu0 %v71
    %91 = vmatpush.msra.mxu0 %v70
    %92 = vmatpush.msra.mxu0 %v69
    %93 = vmatpush.msra.mxu0 %v68
    %94 = vmatpush.msra.mxu0 %v67
    %95 = vmatpush.msra.mxu0 %v66
    %96 = vmatpush.msra.mxu0 %v65
    %97 = vmatpush.msra.mxu0 %v64
    %98 = vmatpush.msra.mxu0 %v63
    %99 = vmatmul.f32.gmra.mxu0 %v47
    %v100 = vpop.f32.mrf.mxu0
    %v101 = vadd.f32 %v81, %v100
    %102 = vmatmul.f32.gmra.mxu0 %v48
    %v103 = vpop.f32.mrf.mxu0
    %v104 = vadd.f32 %v81, %v103
    %105 = vmatmul.f32.gmra.mxu0 %v49
    %v106 = vpop.f32.mrf.mxu0
    %v107 = vadd.f32 %v81, %v106
    %108 = vmatmul.f32.gmra.mxu0 %v50
    %v109 = vpop.f32.mrf.mxu0
    %v110 = vadd.f32 %v81, %v109
    %111 = vmatmul.f32.gmra.mxu0 %v51
    %v112 = vpop.f32.mrf.mxu0
    %v113 = vadd.f32 %v81, %v112
    %114 = vmatmul.f32.gmra.mxu0 %v52
    %v115 = vpop.f32.mrf.mxu0
    %v116 = vadd.f32 %v81, %v115
    %117 = vmatmul.f32.gmra.mxu0 %v53
    %v118 = vpop.f32.mrf.mxu0
    %v119 = vadd.f32 %v81, %v118
    %120 = vmatmul.f32.gmra.mxu0 %v54
    %v121 = vpop.f32.mrf.mxu0
    %v122 = vadd.f32 %v81, %v121
    %123 = vmatmul.f32.gmra.mxu0 %v55
    %v124 = vpop.f32.mrf.mxu0
    %v125 = vadd.f32 %v81, %v124
    %126 = vmatmul.f32.gmra.mxu0 %v56
    %v127 = vpop.f32.mrf.mxu0
    %v128 = vadd.f32 %v81, %v127
    %129 = vmatmul.f32.gmra.mxu0 %v57
    %v130 = vpop.f32.mrf.mxu0
    %v131 = vadd.f32 %v81, %v130
    %132 = vmatmul.f32.gmra.mxu0 %v58
    %v133 = vpop.f32.mrf.mxu0
    %v134 = vadd.f32 %v81, %v133
    %135 = vmatmul.f32.gmra.mxu0 %v59
    %v136 = vpop.f32.mrf.mxu0
    %v137 = vadd.f32 %v81, %v136
    %138 = vmatmul.f32.gmra.mxu0 %v60
    %v139 = vpop.f32.mrf.mxu0
    %v140 = vadd.f32 %v81, %v139
    %141 = vmatmul.f32.gmra.mxu0 %v61
    %v142 = vpop.f32.mrf.mxu0
    %v143 = vadd.f32 %v81, %v142
    %144 = vmatmul.f32.gmra.mxu0 %v62
    %v145 = vpop.f32.mrf.mxu0
    %v146 = vadd.f32 %v81, %v145
    %147 = vdwg.mxu0
    %v148 = vmax.f32 %v101, 0.0
    %v149 = vmax.f32 %v104, 0.0
    %v150 = vmax.f32 %v107, 0.0
    %v151 = vmax.f32 %v110, 0.0
    %v152 = vmax.f32 %v113, 0.0
    %v153 = vmax.f32 %v116, 0.0
    %v154 = vmax.f32 %v119, 0.0
    %v155 = vmax.f32 %v122, 0.0
    %v156 = vmax.f32 %v125, 0.0
    %v157 = vmax.f32 %v128, 0.0
    %v158 = vmax.f32 %v131, 0.0
    %v159 = vmax.f32 %v134, 0.0
    %v160 = vmax.f32 %v137, 0.0
    %v161 = vmax.f32 %v140, 0.0
    %v162 = vmax.f32 %v143, 0.0
    %v163 = vmax.f32 %v146, 0.0
    %164 = vst [vmem:[#allocation7] sm:$0xff] %v148
    %165 = vst [vmem:[#allocation7 + $0x8] sm:$0xff] %v149
    %166 = vst [vmem:[#allocation7 + $0x10] sm:$0xff] %v150
    %167 = vst [vmem:[#allocation7 + $0x18] sm:$0xff] %v151
    %168 = vst [vmem:[#allocation7 + $0x20] sm:$0xff] %v152
    %169 = vst [vmem:[#allocation7 + $0x28] sm:$0xff] %v153
    %170 = vst [vmem:[#allocation7 + $0x30] sm:$0xff] %v154
    %171 = vst [vmem:[#allocation7 + $0x38] sm:$0xff] %v155
    %172 = vst [vmem:[#allocation7 + $0x40] sm:$0xff] %v156
    %173 = vst [vmem:[#allocation7 + $0x48] sm:$0xff] %v157
    %174 = vst [vmem:[#allocation7 + $0x50] sm:$0xff] %v158
    %175 = vst [vmem:[#allocation7 + $0x58] sm:$0xff] %v159
    %176 = vst [vmem:[#allocation7 + $0x60] sm:$0xff] %v160
    %177 = vst [vmem:[#allocation7 + $0x68] sm:$0xff] %v161
    %178 = vst [vmem:[#allocation7 + $0x70] sm:$0xff] %v162
    %179 = vst [vmem:[#allocation7 + $0x78] sm:$0xff] %v163
    // Predicated region
    $region22: #{tpu_custom_call.1} parent=1 // pred_check
      _
    $region23: #{tpu_custom_call.1} parent=1 // pred_check_branch
      %181 = sbr.rel (0) target = $region25
    $region24: #{tpu_custom_call.1} parent=1 // pred_region
      %183 = vsyncadd [#allocation4], 0
      %s184 = sshll.u32 [#allocation7], 4
      %s185 = int_to_ptr.vmem [resolvable:$true] %s184
      %s186 = sshll.u32 %s3, 4
      %s187 = int_to_ptr.hbm [resolvable:$true] %s186
      %192 = dma.vmem_to_hbm [thread:$0]  %s185, 2048, %s187, [#allocation4], 128, 128, 8
    $region25: #{tpu_custom_call.1} parent=1 // pred_fallthru
      _
    // Predicated region
    $region26: #{tpu_custom_call.1} parent=1 // pred_check
      _
    $region27: #{tpu_custom_call.1} parent=1 // pred_check_branch
      %194 = sbr.rel (0) target = $region29
    $region28: #{tpu_custom_call.1} parent=1 // pred_region
      %196 = dma.done [#allocation4], 2048
    $region29: #{tpu_custom_call.1} parent=1 // pred_fallthru
      _
    %197 = vsyncpa [#allocation3], 1
    %198 = vsyncpa [#allocation6], 1
    %199 = vsyncpa [#allocation4], 1

</llo_original>
